<compile_context>
chip_gen: v5e
topology: v5e:2x2
jax: 0.10.0
libtpu: 0.0.40
codegen_flags: <defaults>
</compile_context>

<pallas_src>
import jax
import jax.numpy as jnp
import numpy as np
from jax import lax
from jax.experimental import pallas as pl
from jax.experimental.pallas import tpu as pltpu

ROWS = 8      # output sublane rows (5 used: p0, p1, counter, relu_left, relu_right)
CHUNK = 128   # timesteps per grid step == one lane-dense (8,128) output tile


def _make_dyck1_chunk_kernel(total_steps):
    """Kernel processing CHUNK timesteps of the recurrence per grid step."""

    def kernel(x_ref, init_ref, out_ref, state_ref):
        # x_ref    : SMEM (T,)  f32  scalar-prefetched token sequence
        # init_ref : SMEM (3,)  f32  [counter_rec, relu1_rec, relu2_rec] at t==0
        # out_ref  : VMEM (8, CHUNK) f32  packed per-step outputs for this chunk
        # state_ref: SMEM (3,)  f32  recurrent state carried across chunks
        chunk = pl.program_id(0)
        base = chunk * CHUNK

        @pl.when(chunk == 0)
        def _():
            state_ref[0] = init_ref[0]
            state_ref[1] = init_ref[1]
            state_ref[2] = init_ref[2]

        zero = jnp.float32(0.0)
        lane = lax.broadcasted_iota(jnp.int32, (1, CHUNK), 1)   # hoisted, once/chunk
        zrow = jnp.zeros((1, CHUNK), jnp.float32)

        def step(t, carry):
            c_rec, r1_rec, r2_rec, o1_row, c_row, rl_row, rr_row = carry
            x = x_ref[base + t]
            # counter = ReLU([[1,0],[0,1]] @ [x, counter_rec] + 0)
            cc0 = jnp.maximum(x, zero)
            cc1 = jnp.maximum(c_rec, zero)
            # l2n1 = ReLU([1,-1,1] . [cc0, cc1, relu1_rec] + 0)
            relu1 = jnp.maximum(cc0 - cc1 + r1_rec, zero)
            # l2n2 = ReLU([-1] . [cc1] + 0)
            relu2 = jnp.maximum(-cc1, zero)
            # left branch: l3n1 (w=1) -> ReLU -> l4n1 (w=1) -> ReLU
            relu_left = jnp.maximum(jnp.maximum(relu1, zero), zero)
            # right branch: l3n2 ([1,1]) -> ReLU -> l4n2 ([-1,1] on [rr, relu2_rec]) -> ReLU
            rr = jnp.maximum(relu1 + relu2, zero)
            relu_right = jnp.maximum(-rr + r2_rec, zero)
            # out layer [[0,0],[1,1]], bias 0:  o0 = 0, o1 = relu_left + relu_right
            o1 = relu_left + relu_right

            # Drop this step's 4 scalars into lane t of the packed rows.
            sel = lane == t
            o1_row = jnp.where(sel, o1, o1_row)
            c_row = jnp.where(sel, cc1, c_row)
            rl_row = jnp.where(sel, relu1, rl_row)
            rr_row = jnp.where(sel, relu_right, rr_row)
            # New recurrent state (matches the module's rec-output -> rec-input wiring).
            return cc1, relu1, relu_right, o1_row, c_row, rl_row, rr_row

        n_steps = jnp.minimum(jnp.int32(total_steps) - base, jnp.int32(CHUNK))
        carry0 = (state_ref[0], state_ref[1], state_ref[2], zrow, zrow, zrow, zrow)
        c_f, r1_f, r2_f, o1_row, c_row, rl_row, rr_row = lax.fori_loop(
            0, n_steps, step, carry0)

        # Carry the recurrent state into the next chunk.
        state_ref[0] = c_f
        state_ref[1] = r1_f
        state_ref[2] = r2_f

        # Batched 2-way softmax epilogue (o0 = 0, o1 >= 0, so exp(-o1) <= 1):
        # one vectorized exp + one exact reciprocal per chunk, off the serial path.
        e = jnp.exp(-o1_row)
        recip = pl.reciprocal(e + 1.0, approx=False)
        out_ref[0:1, :] = e * recip          # softmax[0]
        out_ref[1:2, :] = recip              # softmax[1]
        out_ref[2:3, :] = c_row              # counter_rec_output
        out_ref[3:4, :] = rl_row             # relu_left_rec_output
        out_ref[4:5, :] = rr_row             # relu_right_rec_output
        out_ref[5:8, :] = jnp.zeros((3, CHUNK), jnp.float32)   # unused rows

    return kernel


def dyck1_forward_sequence(xs, counter_rec_init, relu1_rec_init, relu2_rec_init):
    """Run the recurrence over the whole sequence xs in one pallas_call.

    Returns per-step (softmax (T,2), counter_rec (T,), relu_left_rec (T,),
    relu_right_rec (T,)).
    """
    xs = jnp.ravel(jnp.asarray(xs, dtype=jnp.float32))
    T = int(xs.shape[0])
    nc = pl.cdiv(T, CHUNK)
    T_pad = nc * CHUNK
    init = jnp.concatenate([
        jnp.ravel(jnp.asarray(counter_rec_init, dtype=jnp.float32))[:1],
        jnp.ravel(jnp.asarray(relu1_rec_init, dtype=jnp.float32))[:1],
        jnp.ravel(jnp.asarray(relu2_rec_init, dtype=jnp.float32))[:1],
    ])

    out = pl.pallas_call(
        _make_dyck1_chunk_kernel(T),
        out_shape=jax.ShapeDtypeStruct((ROWS, T_pad), jnp.float32),
        grid_spec=pltpu.PrefetchScalarGridSpec(
            num_scalar_prefetch=2,          # xs and init land in SMEM
            grid=(nc,),
            in_specs=[],
            out_specs=pl.BlockSpec((ROWS, CHUNK),
                                   lambda c, xs_s, init_s: (0, c)),
            scratch_shapes=[pltpu.SMEM((3,), jnp.float32)],
        ),
        compiler_params=pltpu.CompilerParams(
            dimension_semantics=("arbitrary",)),   # sequential recurrence
    )(xs, init)

    softmax_out = out[0:2, :T].T        # (T, 2)
    counter_rec = out[2, :T]            # (T,)
    relu_left_rec = out[3, :T]          # (T,)
    relu_right_rec = out[4, :T]         # (T,)
    return softmax_out, counter_rec, relu_left_rec, relu_right_rec


def dyck1_forward(x, counter_rec_input, relu1_rec_input, relu2_rec_input):
    """Single-step forward with the same signature/returns as the PyTorch Net."""
    sm, c, rl, rr = dyck1_forward_sequence(
        x, counter_rec_input, relu1_rec_input, relu2_rec_input)
    return sm[0], c[0:1], rl[0:1], rr[0:1]


def reference_sequence(xs, c0, r1_0, r2_0):
    """Pure-numpy float32 replica of the PyTorch forward, stepped over xs."""
    f = np.float32
    c, r1, r2 = f(c0), f(r1_0), f(r2_0)
    sms, recs = [], []
    for xv in np.asarray(xs, dtype=np.float32):
        x = f(xv)
        cc0 = np.maximum(x, f(0))
        cc1 = np.maximum(c, f(0))
        relu1 = np.maximum(cc0 - cc1 + r1, f(0))
        relu2 = np.maximum(-cc1, f(0))
        relu_left = np.maximum(np.maximum(relu1, f(0)), f(0))
        rr = np.maximum(relu1 + relu2, f(0))
        relu_right = np.maximum(-rr + r2, f(0))
        o = np.array([f(0), relu_left + relu_right], dtype=np.float32)
        e = np.exp(o - o.max())
        sm = e / e.sum()
        sms.append(sm)
        recs.append([cc1, relu1, relu_right])
        c, r1, r2 = cc1, relu1, relu_right
    return np.asarray(sms, np.float32), np.asarray(recs, np.float32)


def _check(outs, xs, c0, r1_0, r2_0):
    ref_sm, ref_rec = reference_sequence(
        np.asarray(xs), float(c0[0]), float(r1_0[0]), float(r2_0[0]))
    np.testing.assert_allclose(np.asarray(outs[0]), ref_sm, rtol=1e-5, atol=1e-6)
    np.testing.assert_allclose(np.asarray(outs[1]), ref_rec[:, 0], rtol=1e-5, atol=1e-5)
    np.testing.assert_allclose(np.asarray(outs[2]), ref_rec[:, 1], rtol=1e-5, atol=1e-5)
    np.testing.assert_allclose(np.asarray(outs[3]), ref_rec[:, 2], rtol=1e-5, atol=1e-5)
    return ref_sm, ref_rec


if __name__ == "__main__":
    key = jax.random.PRNGKey(0)
    kx, kc, k1, k2, kx2 = jax.random.split(key, 5)
    T = 8
    xs = jax.random.normal(kx, (T,), dtype=jnp.float32)
    c0 = jax.random.normal(kc, (1,), dtype=jnp.float32)
    r1_0 = jax.random.normal(k1, (1,), dtype=jnp.float32)
    r2_0 = jax.random.normal(k2, (1,), dtype=jnp.float32)

    # Single-chunk path (T = 8 -> one grid step).
    outs = jax.block_until_ready(dyck1_forward_sequence(xs, c0, r1_0, r2_0))
    ref_sm, ref_rec = _check(outs, xs, c0, r1_0, r2_0)

    # Multi-chunk path (T = 300 -> 3 grid steps) to exercise cross-chunk state carry.
    T2 = 300
    xs2 = jax.random.normal(kx2, (T2,), dtype=jnp.float32)
    outs2 = jax.block_until_ready(dyck1_forward_sequence(xs2, c0, r1_0, r2_0))
    _check(outs2, xs2, c0, r1_0, r2_0)

    # Single-step call with the original module signature (T = 1).
    step = jax.block_until_ready(dyck1_forward(xs[0:1], c0, r1_0, r2_0))
    np.testing.assert_allclose(np.asarray(step[0]), ref_sm[0], rtol=1e-5, atol=1e-6)
    np.testing.assert_allclose(np.asarray(step[1]), ref_rec[0:1, 0], rtol=1e-5, atol=1e-5)
    np.testing.assert_allclose(np.asarray(step[2]), ref_rec[0:1, 1], rtol=1e-5, atol=1e-5)
    np.testing.assert_allclose(np.asarray(step[3]), ref_rec[0:1, 2], rtol=1e-5, atol=1e-5)

    print("KERNEL_OK")
</pallas_src>

<mosaic_0001>
module attributes {stable_mosaic.version = 11 : i64} {
  func.func @kernel(%arg0: i32, %arg1: memref<8xf32, #tpu.memory_space<smem>>, %arg2: memref<3xf32, #tpu.memory_space<smem>>, %arg3: memref<8x128xf32, #tpu.memory_space<vmem>>, %arg4: memref<3xf32, #tpu.memory_space<smem>>) attributes {dimension_semantics = [#tpu.dimension_semantics<arbitrary>], iteration_bounds = array<i64: 1>, scalar_prefetch = 2 : i64, scratch_operands = 1 : i64, tpu.core_type = #tpu.core_type<tc>, window_params = [{transform_indices = @transform_0, window_bounds = array<i64: 8, 128>}]} {
    %c128_i32 = arith.constant 128 : i32
    %0 = arith.muli %arg0, %c128_i32 : i32
    %c0_i32 = arith.constant 0 : i32
    %1 = arith.cmpi eq, %arg0, %c0_i32 : i32
    %2 = arith.extui %1 : i1 to i32
    %c0_i32_0 = arith.constant 0 : i32
    %3 = arith.cmpi ne, %2, %c0_i32_0 : i32
    scf.if %3 {
      %c0_19 = arith.constant 0 : index
      %31 = memref.load %arg2[%c0_19] : memref<3xf32, #tpu.memory_space<smem>>
      %c0_20 = arith.constant 0 : index
      %32 = memref.load %arg4[%c0_20] : memref<3xf32, #tpu.memory_space<smem>>
      memref.store %31, %arg4[%c0_20] : memref<3xf32, #tpu.memory_space<smem>>
      %c1_21 = arith.constant 1 : index
      %33 = memref.load %arg2[%c1_21] : memref<3xf32, #tpu.memory_space<smem>>
      %c1_22 = arith.constant 1 : index
      %34 = memref.load %arg4[%c1_22] : memref<3xf32, #tpu.memory_space<smem>>
      memref.store %33, %arg4[%c1_22] : memref<3xf32, #tpu.memory_space<smem>>
      %c2_23 = arith.constant 2 : index
      %35 = memref.load %arg2[%c2_23] : memref<3xf32, #tpu.memory_space<smem>>
      %c2_24 = arith.constant 2 : index
      %36 = memref.load %arg4[%c2_24] : memref<3xf32, #tpu.memory_space<smem>>
      memref.store %35, %arg4[%c2_24] : memref<3xf32, #tpu.memory_space<smem>>
    } else {
    }
    %4 = tpu.iota {dimensions = array<i32: 1>} : vector<1x128xi32>
    %cst = arith.constant 0.000000e+00 : f32
    %5 = vector.broadcast %cst : f32 to vector<1x128xf32>
    %c8_i32 = arith.constant 8 : i32
    %6 = arith.subi %c8_i32, %0 : i32
    %c128_i32_1 = arith.constant 128 : i32
    %7 = arith.minsi %6, %c128_i32_1 : i32
    %c0 = arith.constant 0 : index
    %8 = memref.load %arg4[%c0] : memref<3xf32, #tpu.memory_space<smem>>
    %c1 = arith.constant 1 : index
    %9 = memref.load %arg4[%c1] : memref<3xf32, #tpu.memory_space<smem>>
    %c2 = arith.constant 2 : index
    %10 = memref.load %arg4[%c2] : memref<3xf32, #tpu.memory_space<smem>>
    %cst_2 = arith.constant 0.000000e+00 : f32
    %c0_i32_3 = arith.constant 0 : i32
    %11 = arith.subi %7, %c0_i32_3 : i32
    %12 = arith.addi %c0_i32_3, %11 : i32
    %c1_i32 = arith.constant 1 : i32
    %13:7 = scf.for %arg5 = %c0_i32_3 to %12 step %c1_i32 iter_args(%arg6 = %8, %arg7 = %9, %arg8 = %10, %arg9 = %5, %arg10 = %5, %arg11 = %5, %arg12 = %5) -> (f32, f32, f32, vector<1x128xf32>, vector<1x128xf32>, vector<1x128xf32>, vector<1x128xf32>)  : i32 {
      %31 = arith.addi %0, %arg5 : i32
      %32 = arith.index_cast %31 : i32 to index
      %33 = memref.load %arg1[%32] : memref<8xf32, #tpu.memory_space<smem>>
      %34 = arith.maximumf %33, %cst_2 : f32
      %35 = arith.maximumf %arg6, %cst_2 : f32
      %36 = arith.subf %34, %35 : f32
      %37 = arith.addf %36, %arg7 : f32
      %38 = arith.maximumf %37, %cst_2 : f32
      %cst_19 = arith.constant 0.000000e+00 : f32
      %39 = arith.subf %cst_19, %35 : f32
      %40 = arith.maximumf %39, %cst_2 : f32
      %41 = arith.maximumf %38, %cst_2 : f32
      %42 = arith.maximumf %41, %cst_2 : f32
      %43 = arith.addf %38, %40 : f32
      %44 = arith.maximumf %43, %cst_2 : f32
      %cst_20 = arith.constant 0.000000e+00 : f32
      %45 = arith.subf %cst_20, %44 : f32
      %46 = arith.addf %45, %arg8 : f32
      %47 = arith.maximumf %46, %cst_2 : f32
      %48 = arith.addf %42, %47 : f32
      %49 = vector.broadcast %arg5 : i32 to vector<1x128xi32>
      %50 = arith.cmpi eq, %4, %49 : vector<1x128xi32>
      %51 = vector.broadcast %48 : f32 to vector<1x128xf32>
      %52 = arith.select %50, %51, %arg9 : vector<1x128xi1>, vector<1x128xf32>
      %53 = vector.broadcast %35 : f32 to vector<1x128xf32>
      %54 = arith.select %50, %53, %arg10 : vector<1x128xi1>, vector<1x128xf32>
      %55 = vector.broadcast %38 : f32 to vector<1x128xf32>
      %56 = arith.select %50, %55, %arg11 : vector<1x128xi1>, vector<1x128xf32>
      %57 = vector.broadcast %47 : f32 to vector<1x128xf32>
      %58 = arith.select %50, %57, %arg12 : vector<1x128xi1>, vector<1x128xf32>
      scf.yield %35, %38, %47, %52, %54, %56, %58 : f32, f32, f32, vector<1x128xf32>, vector<1x128xf32>, vector<1x128xf32>, vector<1x128xf32>
    }
    %c0_4 = arith.constant 0 : index
    %14 = memref.load %arg4[%c0_4] : memref<3xf32, #tpu.memory_space<smem>>
    memref.store %13#0, %arg4[%c0_4] : memref<3xf32, #tpu.memory_space<smem>>
    %c1_5 = arith.constant 1 : index
    %15 = memref.load %arg4[%c1_5] : memref<3xf32, #tpu.memory_space<smem>>
    memref.store %13#1, %arg4[%c1_5] : memref<3xf32, #tpu.memory_space<smem>>
    %c2_6 = arith.constant 2 : index
    %16 = memref.load %arg4[%c2_6] : memref<3xf32, #tpu.memory_space<smem>>
    memref.store %13#2, %arg4[%c2_6] : memref<3xf32, #tpu.memory_space<smem>>
    %cst_7 = arith.constant 0.000000e+00 : f32
    %17 = vector.broadcast %cst_7 : f32 to vector<1x128xf32>
    %18 = arith.subf %17, %13#3 : vector<1x128xf32>
    %19 = math.exp %18 : vector<1x128xf32>
    %cst_8 = arith.constant 1.000000e+00 : f32
    %20 = vector.broadcast %cst_8 : f32 to vector<1x128xf32>
    %21 = arith.addf %19, %20 : vector<1x128xf32>
    %22 = tpu.reciprocal %21 : vector<1x128xf32> -> vector<1x128xf32>
    %23 = arith.mulf %19, %22 : vector<1x128xf32>
    %c0_9 = arith.constant 0 : index
    %c0_10 = arith.constant 0 : index
    %24 = vector.load %arg3[%c0_9, %c0_10] : memref<8x128xf32, #tpu.memory_space<vmem>>, vector<1x128xf32>
    tpu.vector_store %arg3[%c0_9, %c0_10], %23 {strides = array<i32>} : memref<8x128xf32, #tpu.memory_space<vmem>>, vector<1x128xf32>,
    %c1_11 = arith.constant 1 : index
    %c0_12 = arith.constant 0 : index
    %25 = vector.load %arg3[%c1_11, %c0_12] : memref<8x128xf32, #tpu.memory_space<vmem>>, vector<1x128xf32>
    tpu.vector_store %arg3[%c1_11, %c0_12], %22 {strides = array<i32>} : memref<8x128xf32, #tpu.memory_space<vmem>>, vector<1x128xf32>,
    %c2_13 = arith.constant 2 : index
    %c0_14 = arith.constant 0 : index
    %26 = vector.load %arg3[%c2_13, %c0_14] : memref<8x128xf32, #tpu.memory_space<vmem>>, vector<1x128xf32>
    tpu.vector_store %arg3[%c2_13, %c0_14], %13#4 {strides = array<i32>} : memref<8x128xf32, #tpu.memory_space<vmem>>, vector<1x128xf32>,
    %c3 = arith.constant 3 : index
    %c0_15 = arith.constant 0 : index
    %27 = vector.load %arg3[%c3, %c0_15] : memref<8x128xf32, #tpu.memory_space<vmem>>, vector<1x128xf32>
    tpu.vector_store %arg3[%c3, %c0_15], %13#5 {strides = array<i32>} : memref<8x128xf32, #tpu.memory_space<vmem>>, vector<1x128xf32>,
    %c4 = arith.constant 4 : index
    %c0_16 = arith.constant 0 : index
    %28 = vector.load %arg3[%c4, %c0_16] : memref<8x128xf32, #tpu.memory_space<vmem>>, vector<1x128xf32>
    tpu.vector_store %arg3[%c4, %c0_16], %13#6 {strides = array<i32>} : memref<8x128xf32, #tpu.memory_space<vmem>>, vector<1x128xf32>,
    %cst_17 = arith.constant 0.000000e+00 : f32
    %29 = vector.broadcast %cst_17 : f32 to vector<3x128xf32>
    %c5 = arith.constant 5 : index
    %c0_18 = arith.constant 0 : index
    %30 = vector.load %arg3[%c5, %c0_18] : memref<8x128xf32, #tpu.memory_space<vmem>>, vector<3x128xf32>
    tpu.vector_store %arg3[%c5, %c0_18], %29 {strides = array<i32>} : memref<8x128xf32, #tpu.memory_space<vmem>>, vector<3x128xf32>,
    return
  }
  func.func @transform_0(%arg0: i32, %arg1: memref<8xf32, #tpu.memory_space<smem>>, %arg2: memref<3xf32, #tpu.memory_space<smem>>) -> (i32, i32) {
    %c0_i32 = arith.constant 0 : i32
    %c0_i32_0 = arith.constant 0 : i32
    return %c0_i32, %arg0 : i32, i32
  }
}

</mosaic_0001>

<llo_original>
// kernel: tpu_custom_call.1
$region0: #{tpu_custom_call.1}
  #allocation0 [shape = 'u32[]', space=smem, size = 0x4, offset = 0x4, fixed_abs, tag = 'smem constant byte address 0x4 - core index']
  #allocation1 [shape = 'u32[72,128]{1,0:T(1,128)}', space=vmem, size = 0x9000, scoped, tag = 'internal scratch']
  #allocation2 [shape = 'f32[3]{0:T(128)}', space=smem, size = 0x200, scoped, tag = 'scratch operand']
  #allocation3 [shape = 's32[1]{0}', space=sflag, size = 0x4, scoped, tag = 'scoped memory for tpu_custom_call.1']
  #allocation4 [shape = 'u8[512]{0}', space=smem, size = 0x200, scoped, tag = 'prefetched SMEM operand 0']
  #allocation5 [shape = 'u8[512]{0}', space=smem, size = 0x200, scoped, tag = 'prefetched SMEM operand 1']
  %s0 = inlined_call_operand.hbm [shape: f32[8], index: 0, kind: input, shape index: {}]
  %s1 = inlined_call_operand.hbm [shape: f32[3], index: 1, kind: input, shape index: {}]
  %s2 = inlined_call_operand.hbm [shape: f32[8,128], index: 2, kind: output, shape index: {}]
  %s3 = sld [smem:[#allocation0]]
  $region21: #{tpu_custom_call.1} parent=0
    _
  %s5 = ssub.s32 1, %s3
  %s6 = scalar_select 0, %s5, %s3
  %s8 = sshll.u32 %s0, 4
  %s9 = int_to_ptr.hbm [resolvable:$true] %s8
  %11 = dma.hbm_to_smem %s9, 16, [#allocation4], [#allocation3]
  %s13 = sshll.u32 %s1, 4
  %s14 = int_to_ptr.hbm [resolvable:$true] %s13
  %16 = dma.hbm_to_smem %s14, 16, [#allocation5], [#allocation3]
  %18 = dma.done [#allocation3], 32
  %19 = sfence
  $region1: #{tpu_custom_call.1} parent=0
    #allocation6 [shape = 'u8[4096]{0}', space=vmem, size = 0x1000, scoped, tag = 'output window, operand 0, single buffered']
    #allocation7 [shape = 's32[1]{0}', space=sflag, size = 0x4, scoped, tag = 'scoped memory for tpu_custom_call.1']
    %20 = vsyncpa [#allocation7], 0
    %s21 = smul.u32 0, 128
    %p22 = scmp.eq.s32.totalorder 0, 0
    // Predicated region
    $region2: #{tpu_custom_call.1} parent=1 // pred_check
      %p23 = pneg %p22
    $region3: #{tpu_custom_call.1} parent=1 // pred_check_branch
      %25 = sbr.rel (%p23) target = $region5
    $region4: #{tpu_custom_call.1} parent=1 // pred_region
      %s26 = sld [smem:[#allocation5]]
      %s27 = scalar_lea.smem [#allocation2], 0
      %28 = sst [smem:[%s27]] %s26
      %s29 = sld [smem:[#allocation5 + $0x1]]
      %s30 = scalar_lea.smem [#allocation2], 1
      %31 = sst [smem:[%s30]] %s29
      %s32 = sld [smem:[#allocation5 + $0x2]]
      %s33 = scalar_lea.smem [#allocation2], 2
      %34 = sst [smem:[%s33]] %s32
    $region5: #{tpu_custom_call.1} parent=1 // pred_fallthru
      _
    %v35 = vlaneseq
    %v36 = vand.u32 %v35, 127
    %s37 = ssub.s32 8, %s21
    %p38 = scmp.lt.s32.totalorder %s37, 128
    %s39 = scalar_select %p38, %s37, 128
    %s40 = sld [smem:[#allocation2]]
    %s41 = sld [smem:[#allocation2 + $0x1]]
    %s42 = sld [smem:[#allocation2 + $0x2]]
    // While loop
    $region6: #{tpu_custom_call.1} parent=1 // loop_pre_header
      _
    $region7: #{tpu_custom_call.1} parent=1 // loop_header
      %s44 = sphi 0, %s46
      %p45 = scmp.ge.s32.totalorder %s44, %s39
      %s49 = sphi %s40, %s59
      %s50 = sphi %s41, %s62
      %s51 = sphi %s42, %s71
      %v52 = vphi 0.0, %v76
      %v53 = vphi 0.0, %v78
      %v54 = vphi 0.0, %v80
      %v55 = vphi 0.0, %v82
    $region8: #{tpu_custom_call.1} parent=1 // loop_header_branch
      %48 = sbr.rel (%p45) target = $region12
    $region9: #{tpu_custom_call.1} parent=1 // loop_body
      %s56 = sadd.s32 %s21, %s44
      %s57 = sld [smem:[#allocation4 + %s56]]
      %s58 = smax.f32 %s57, 0.0
      %s59 = smax.f32 %s49, 0.0
      %s60 = ssub.f32 %s58, %s59
      %s61 = sadd.f32 %s60, %s50
      %s62 = smax.f32 %s61, 0.0
      %s63 = ssub.f32 0.0, %s59
      %s64 = smax.f32 %s63, 0.0
      %s65 = smax.f32 %s62, 0.0
      %s66 = smax.f32 %s65, 0.0
      %s67 = sadd.f32 %s62, %s64
      %s68 = smax.f32 %s67, 0.0
      %s69 = ssub.f32 0.0, %s68
      %s70 = sadd.f32 %s69, %s51
      %s71 = smax.f32 %s70, 0.0
      %s72 = sadd.f32 %s66, %s71
      %v73 = vstv %s44
      %vm74 = vcmp.eq.s32.totalorder %v36, %v73
      %v75 = vstv %s72
      %v76 = vsel %vm74, %v75, %v52
      %v77 = vstv %s59
      %v78 = vsel %vm74, %v77, %v53
      %v79 = vstv %s62
      %v80 = vsel %vm74, %v79, %v54
      %v81 = vstv %s71
      %v82 = vsel %vm74, %v81, %v55
    $region10: #{tpu_custom_call.1} parent=1 // loop_footer
      %s46 = sadd.s32 %s44, 1
    $region11: #{tpu_custom_call.1} parent=1 // loop_footer_branch
      %43 = sbr.rel target = $region7
    $region12: #{tpu_custom_call.1} parent=1 // loop_exit
      _
    %s83 = scalar_lea.smem [#allocation2], 0
    %84 = sst [smem:[%s83]] %s49
    %s85 = scalar_lea.smem [#allocation2], 1
    %86 = sst [smem:[%s85]] %s50
    %s87 = scalar_lea.smem [#allocation2], 2
    %88 = sst [smem:[%s87]] %s51
    %v89 = vsub.f32 0.0, %v52
    %v90 = vmul.f32 %v89, 1.442695
    %v91 = vpow.pop %v90
    %v92 = vadd.f32 %v91, 1.0
    %v93 = vrcp.pop %v92
    %v94 = vmul.f32 %v92, %v93
    %v95 = vsub.f32 1.0, %v94
    %v96 = vmul.f32 %v93, %v95
    %v97 = vadd.f32 %v93, %v96
    %vm98 = vweird.f32 %v92
    %vm99 = vweird.f32 %v93
    %vm100 = vmor %vm98, %vm99
    %v101 = vsel %vm100, %v93, %v97
    %v102 = vand.u32 2147483647, %v92
    %vm103 = vcmp.eq.f32.partialorder %v102, 8.507059e+37
    %v104 = vand.u32 %v92, 2147483648
    %v105 = vor.u32 1.1754944e-38, %v104
    %v106 = vsel %vm103, %v105, %v101
    %v107 = vmul.f32 %v91, %v106
    %108 = vst [vmem:[#allocation6] sm:$0x1] %v107
    %109 = vst [vmem:[#allocation6 + $0x1] sm:$0x1] %v106
    %110 = vst [vmem:[#allocation6 + $0x2] sm:$0x1] %v53
    %111 = vst [vmem:[#allocation6 + $0x3] sm:$0x1] %v54
    %112 = vst [vmem:[#allocation6 + $0x4] sm:$0x1] %v55
    %113 = vst [vmem:[#allocation6 + $0x5] sm:$0x7] 0.0
    // Predicated region
    $region13: #{tpu_custom_call.1} parent=1 // pred_check
      _
    $region14: #{tpu_custom_call.1} parent=1 // pred_check_branch
      %115 = sbr.rel (0) target = $region16
    $region15: #{tpu_custom_call.1} parent=1 // pred_region
      %117 = vsyncadd [#allocation7], 0
      %s119 = sshll.u32 [#allocation6], 4
      %s120 = int_to_ptr.vmem [resolvable:$true] %s119
      %s121 = sshll.u32 %s2, 4
      %s122 = int_to_ptr.hbm [resolvable:$true] %s121
      %124 = dma.vmem_to_hbm [thread:$0]  %s120, 128, %s122, [#allocation7]
    $region16: #{tpu_custom_call.1} parent=1 // pred_fallthru
      _
    // Predicated region
    $region17: #{tpu_custom_call.1} parent=1 // pred_check
      _
    $region18: #{tpu_custom_call.1} parent=1 // pred_check_branch
      %126 = sbr.rel (0) target = $region20
    $region19: #{tpu_custom_call.1} parent=1 // pred_region
      %128 = dma.done [#allocation7], 128
    $region20: #{tpu_custom_call.1} parent=1 // pred_fallthru
      _
    %129 = vsyncpa [#allocation7], 1

</llo_original>
